<compile_context>
chip_gen: v6e
topology: v6e:2x2x1
jax: 0.10.0
libtpu: 0.0.40
codegen_flags: <defaults>
</compile_context>

<pallas_src>
import jax
import jax.numpy as jnp
from jax.experimental import pallas as pl
from jax.experimental.pallas import tpu as pltpu


_EPS = 1e-8
_VMEM_LIMIT_BYTES = 32 * 1024 * 1024      # explicit scoped-VMEM limit (all chips)
_TILE_BUDGET_BYTES = 16 * 1024 * 1024     # budget for double-buffered block data


def _taxonomic_kernel(alpha_ref, mean_leaf_ref, logvar_leaf_ref,
                      mean_root_ref, logvar_root_ref, sym_kl_ref):
    """One row-block: TC clusters == 2*TC interleaved leaf rows.

    Inputs (VMEM blocks):
      alpha_ref       : (TC, 1)     sigmoid(cluster_weight)
      mean_leaf_ref   : (2*TC, H)   interleaved child means   [c0, c1, c0, c1, ...]
      logvar_leaf_ref : (2*TC, H)   interleaved child log-variances
    Outputs:
      mean_root_ref   : (TC, H)
      logvar_root_ref : (TC, H)
      sym_kl_ref      : (TC, 1)
    """
    tc = mean_root_ref.shape[0]

    # De-interleave children in VMEM (stride-2 sublane slices): no extra HBM pass.
    m0 = mean_leaf_ref[pl.ds(0, tc, stride=2), :]
    m1 = mean_leaf_ref[pl.ds(1, tc, stride=2), :]
    lv0 = logvar_leaf_ref[pl.ds(0, tc, stride=2), :]
    lv1 = logvar_leaf_ref[pl.ds(1, tc, stride=2), :]

    v0 = jnp.exp(lv0)
    v1 = jnp.exp(lv1)
    r0 = pl.reciprocal(v0)            # exact reciprocal; reused via multiplies
    r1 = pl.reciprocal(v1)

    d = m0 - m1
    d2 = d * d

    # Symmetric KL: the logvar-difference terms cancel -> one fused reduction.
    sym_kl_ref[...] = 0.5 * jnp.sum((v0 + d2) * r1 + (v1 + d2) * r0 - 2.0,
                                    axis=1, keepdims=True)

    # Moment-matched parent Gaussian.
    a = alpha_ref[...]                # (TC, 1), broadcasts over the lane axis
    one_minus_a = 1.0 - a
    mean_root = a * m0 + one_minus_a * m1
    e0 = m0 - mean_root
    e1 = m1 - mean_root
    var_root = a * (v0 + e0 * e0) + one_minus_a * (v1 + e1 * e1)

    mean_root_ref[...] = mean_root
    logvar_root_ref[...] = jnp.log(var_root + jnp.float32(_EPS))


def _pick_row_tile(n_clusters, n_hidden):
    """Largest cluster-row tile whose double-buffered VMEM blocks fit budget."""
    # Per cluster row (f32): leaf inputs 2 tensors * 2 rows * H + outputs 2 * H,
    # all double-buffered by the pipeline (lane-width-1 blocks are negligible).
    per_row_bytes = 2 * (2 * 2 * n_hidden + 2 * n_hidden) * 4
    max_tc = max(8, _TILE_BUDGET_BYTES // per_row_bytes)
    if n_clusters <= max_tc:
        return n_clusters
    t = (max_tc // 8) * 8
    while t >= 8:
        if n_clusters % t == 0:
            return t
        t -= 8
    return n_clusters   # fallback (C not a multiple of 8): single block


def taxonomic_layer_forward(cluster_weight, mean_leaf, logvar_leaf,
                            row_tile=None):
    """JAX wrapper mirroring TaxonomicLayer.forward (unused dkl omitted).

    Args:
      cluster_weight : (C, 1) float32 parameter
      mean_leaf      : (2*C, H) float32, interleaved [child0, child1, ...]
      logvar_leaf    : (2*C, H) float32
      row_tile       : optional cluster-row tile override (must divide C)
    Returns:
      mean_root (C, H), logvar_root (C, H),
      alpha_flat (2*C,) = [a0, 1-a0, a1, 1-a1, ...], sym_kl (C, 1)
    """
    C = cluster_weight.shape[0]
    H = mean_leaf.shape[-1]
    assert mean_leaf.shape == (2 * C, H) and logvar_leaf.shape == (2 * C, H)

    cluster_weight = cluster_weight.astype(jnp.float32)
    mean_leaf = mean_leaf.astype(jnp.float32)
    logvar_leaf = logvar_leaf.astype(jnp.float32)

    alpha = jax.nn.sigmoid(cluster_weight)          # (C, 1): tiny, fuses in XLA

    tc = row_tile if row_tile is not None else _pick_row_tile(C, H)
    assert C % tc == 0, (C, tc)
    grid = (C // tc,)

    out_shapes = (
        jax.ShapeDtypeStruct((C, H), jnp.float32),  # mean_root
        jax.ShapeDtypeStruct((C, H), jnp.float32),  # logvar_root
        jax.ShapeDtypeStruct((C, 1), jnp.float32),  # sym_kl
    )

    mean_root, logvar_root, sym_kl = pl.pallas_call(
        _taxonomic_kernel,
        out_shape=out_shapes,
        grid_spec=pltpu.PrefetchScalarGridSpec(
            num_scalar_prefetch=0,
            grid=grid,
            in_specs=[
                pl.BlockSpec((tc, 1), lambda i: (i, 0)),        # alpha
                pl.BlockSpec((2 * tc, H), lambda i: (i, 0)),    # mean_leaf (interleaved)
                pl.BlockSpec((2 * tc, H), lambda i: (i, 0)),    # logvar_leaf (interleaved)
            ],
            out_specs=[
                pl.BlockSpec((tc, H), lambda i: (i, 0)),
                pl.BlockSpec((tc, H), lambda i: (i, 0)),
                pl.BlockSpec((tc, 1), lambda i: (i, 0)),
            ],
        ),
        compiler_params=pltpu.CompilerParams(
            dimension_semantics=("parallel",),      # rows independent; v7x 2-TC split
            vmem_limit_bytes=_VMEM_LIMIT_BYTES,
        ),
    )(alpha, mean_leaf, logvar_leaf)

    # alpha.reshape(-1) in PyTorch is cat((a, 1-a), dim=1) flattened row-wise.
    alpha_flat = jnp.concatenate([alpha, 1.0 - alpha], axis=1).reshape(-1)
    return mean_root, logvar_root, alpha_flat, sym_kl


def _reference_forward(cluster_weight, mean_leaf, logvar_leaf, n_hidden,
                       eps=_EPS):
    """Pure-JAX reference mirroring the PyTorch code (for verification)."""
    a = jax.nn.sigmoid(cluster_weight)                         # (C, 1)
    alpha = jnp.concatenate([a, 1.0 - a], axis=1)[..., None]   # (C, 2, 1)
    mL = mean_leaf.reshape(-1, 2, n_hidden)
    lvL = logvar_leaf.reshape(-1, 2, n_hidden)
    m0, m1 = mL[:, 0], mL[:, 1]
    lv0, lv1 = lvL[:, 0], lvL[:, 1]

    def kl(ma, la, mb, lb):
        return 0.5 * jnp.sum(lb - la + (jnp.exp(la) + (ma - mb) ** 2)
                             / jnp.exp(lb) - 1.0, axis=1)

    sym_kl = (kl(m0, lv0, m1, lv1) + kl(m1, lv1, m0, lv0))[:, None]
    mean_root = (alpha * mL).sum(axis=1)
    var_leaf = jnp.exp(lvL)
    diff_sq = (mL - mean_root[:, None, :]) ** 2
    var_root = (alpha * (var_leaf + diff_sq)).sum(axis=1)
    logvar_root = jnp.log(var_root + eps)
    return mean_root, logvar_root, alpha.reshape(-1), sym_kl


if __name__ == "__main__":
    n_clusters = 32
    n_hidden = 128            # lane-dense hidden dim

    key = jax.random.PRNGKey(0)
    k1, k2, k3 = jax.random.split(key, 3)

    # Parameter is zeros in the module; use small non-zero values so sigmoid
    # isn't trivially 0.5.
    cluster_weight = 0.1 * jax.random.normal(
        k3, (n_clusters, 1), dtype=jnp.float32)
    mean_leaf = jax.random.normal(
        k1, (n_clusters * 2, n_hidden), dtype=jnp.float32)
    logvar_leaf = 0.5 * jax.random.normal(
        k2, (n_clusters * 2, n_hidden), dtype=jnp.float32)

    refs = _reference_forward(cluster_weight, mean_leaf, logvar_leaf, n_hidden)

    # Exercise both the multi-block pipelined path (row_tile=8 -> grid=(4,))
    # and the auto-tiled path (single block at this small size).
    for row_tile in (8, None):
        outs = taxonomic_layer_forward(cluster_weight, mean_leaf, logvar_leaf,
                                       row_tile=row_tile)
        outs = jax.block_until_ready(outs)
        names = ("mean_root", "logvar_root", "alpha_flat", "sym_kl")
        for name, o, r in zip(names, outs, refs):
            assert o.shape == r.shape, (name, o.shape, r.shape)
            assert jnp.allclose(o, r, atol=1e-4, rtol=1e-4), (
                f"mismatch vs reference: {name} (row_tile={row_tile})")

    print("KERNEL_OK")
</pallas_src>

<mosaic_0001>
module attributes {stable_mosaic.version = 11 : i64} {
  func.func @_taxonomic_kernel(%arg0: i32, %arg1: memref<8x1xf32, #tpu.memory_space<vmem>>, %arg2: memref<16x128xf32, #tpu.memory_space<vmem>>, %arg3: memref<16x128xf32, #tpu.memory_space<vmem>>, %arg4: memref<8x128xf32, #tpu.memory_space<vmem>>, %arg5: memref<8x128xf32, #tpu.memory_space<vmem>>, %arg6: memref<8x1xf32, #tpu.memory_space<vmem>>) attributes {dimension_semantics = [#tpu.dimension_semantics<parallel>], iteration_bounds = array<i64: 4>, scalar_prefetch = 0 : i64, scratch_operands = 0 : i64, tpu.core_type = #tpu.core_type<tc>, window_params = [{transform_indices = @transform_0, window_bounds = array<i64: 8, 1>}, {transform_indices = @transform_1, window_bounds = array<i64: 16, 128>}, {transform_indices = @transform_2, window_bounds = array<i64: 16, 128>}, {transform_indices = @transform_3, window_bounds = array<i64: 8, 128>}, {transform_indices = @transform_4, window_bounds = array<i64: 8, 128>}, {transform_indices = @transform_5, window_bounds = array<i64: 8, 1>}]} {
    %c0 = arith.constant 0 : index
    %c0_0 = arith.constant 0 : index
    %0 = tpu.strided_load %arg2[%c0, %c0_0] {strides = array<i32: 2, 1>} : memref<16x128xf32, #tpu.memory_space<vmem>>, vector<8x128xf32>
    %c1 = arith.constant 1 : index
    %c0_1 = arith.constant 0 : index
    %1 = tpu.strided_load %arg2[%c1, %c0_1] {strides = array<i32: 2, 1>} : memref<16x128xf32, #tpu.memory_space<vmem>>, vector<8x128xf32>
    %c0_2 = arith.constant 0 : index
    %c0_3 = arith.constant 0 : index
    %2 = tpu.strided_load %arg3[%c0_2, %c0_3] {strides = array<i32: 2, 1>} : memref<16x128xf32, #tpu.memory_space<vmem>>, vector<8x128xf32>
    %c1_4 = arith.constant 1 : index
    %c0_5 = arith.constant 0 : index
    %3 = tpu.strided_load %arg3[%c1_4, %c0_5] {strides = array<i32: 2, 1>} : memref<16x128xf32, #tpu.memory_space<vmem>>, vector<8x128xf32>
    %4 = math.exp %2 : vector<8x128xf32>
    %5 = math.exp %3 : vector<8x128xf32>
    %6 = tpu.reciprocal %4 : vector<8x128xf32> -> vector<8x128xf32>
    %7 = tpu.reciprocal %5 : vector<8x128xf32> -> vector<8x128xf32>
    %8 = arith.subf %0, %1 : vector<8x128xf32>
    %9 = arith.mulf %8, %8 : vector<8x128xf32>
    %10 = arith.addf %4, %9 : vector<8x128xf32>
    %11 = arith.mulf %10, %7 : vector<8x128xf32>
    %12 = arith.addf %5, %9 : vector<8x128xf32>
    %13 = arith.mulf %12, %6 : vector<8x128xf32>
    %14 = arith.addf %11, %13 : vector<8x128xf32>
    %cst = arith.constant 2.000000e+00 : f32
    %15 = vector.broadcast %cst : f32 to vector<8x128xf32>
    %16 = arith.subf %14, %15 : vector<8x128xf32>
    %cst_6 = arith.constant dense<0.000000e+00> : vector<8xf32>
    %17 = vector.multi_reduction <add>, %16, %cst_6 [1] : vector<8x128xf32> to vector<8xf32>
    %18 = vector.shape_cast %17 : vector<8xf32> to vector<8x1xf32>
    %cst_7 = arith.constant 5.000000e-01 : f32
    %19 = vector.broadcast %cst_7 : f32 to vector<8x1xf32>
    %20 = arith.mulf %19, %18 : vector<8x1xf32>
    %c0_8 = arith.constant 0 : index
    %c0_9 = arith.constant 0 : index
    %21 = vector.load %arg6[%c0_8, %c0_9] : memref<8x1xf32, #tpu.memory_space<vmem>>, vector<8x1xf32>
    tpu.vector_store %arg6[%c0_8, %c0_9], %20 {strides = array<i32>} : memref<8x1xf32, #tpu.memory_space<vmem>>, vector<8x1xf32>,
    %c0_10 = arith.constant 0 : index
    %c0_11 = arith.constant 0 : index
    %22 = vector.load %arg1[%c0_10, %c0_11] : memref<8x1xf32, #tpu.memory_space<vmem>>, vector<8x1xf32>
    %cst_12 = arith.constant 1.000000e+00 : f32
    %23 = vector.broadcast %cst_12 : f32 to vector<8x1xf32>
    %24 = arith.subf %23, %22 : vector<8x1xf32>
    %25 = vector.broadcast %22 : vector<8x1xf32> to vector<8x128xf32>
    %26 = arith.mulf %25, %0 : vector<8x128xf32>
    %27 = vector.broadcast %24 : vector<8x1xf32> to vector<8x128xf32>
    %28 = arith.mulf %27, %1 : vector<8x128xf32>
    %29 = arith.addf %26, %28 : vector<8x128xf32>
    %30 = arith.subf %0, %29 : vector<8x128xf32>
    %31 = arith.subf %1, %29 : vector<8x128xf32>
    %32 = arith.mulf %30, %30 : vector<8x128xf32>
    %33 = arith.addf %4, %32 : vector<8x128xf32>
    %34 = vector.broadcast %22 : vector<8x1xf32> to vector<8x128xf32>
    %35 = arith.mulf %34, %33 : vector<8x128xf32>
    %36 = arith.mulf %31, %31 : vector<8x128xf32>
    %37 = arith.addf %5, %36 : vector<8x128xf32>
    %38 = vector.broadcast %24 : vector<8x1xf32> to vector<8x128xf32>
    %39 = arith.mulf %38, %37 : vector<8x128xf32>
    %40 = arith.addf %35, %39 : vector<8x128xf32>
    %c0_13 = arith.constant 0 : index
    %c0_14 = arith.constant 0 : index
    %41 = vector.load %arg4[%c0_13, %c0_14] : memref<8x128xf32, #tpu.memory_space<vmem>>, vector<8x128xf32>
    tpu.vector_store %arg4[%c0_13, %c0_14], %29 {strides = array<i32>} : memref<8x128xf32, #tpu.memory_space<vmem>>, vector<8x128xf32>,
    %cst_15 = arith.constant 9.99999993E-9 : f32
    %42 = vector.broadcast %cst_15 : f32 to vector<8x128xf32>
    %43 = arith.addf %40, %42 : vector<8x128xf32>
    %44 = math.log %43 : vector<8x128xf32>
    %c0_16 = arith.constant 0 : index
    %c0_17 = arith.constant 0 : index
    %45 = vector.load %arg5[%c0_16, %c0_17] : memref<8x128xf32, #tpu.memory_space<vmem>>, vector<8x128xf32>
    tpu.vector_store %arg5[%c0_16, %c0_17], %44 {strides = array<i32>} : memref<8x128xf32, #tpu.memory_space<vmem>>, vector<8x128xf32>,
    return
  }
  func.func @transform_0(%arg0: i32) -> (i32, i32) {
    %c0_i32 = arith.constant 0 : i32
    %c0_i32_0 = arith.constant 0 : i32
    return %arg0, %c0_i32 : i32, i32
  }
  func.func @transform_1(%arg0: i32) -> (i32, i32) {
    %c0_i32 = arith.constant 0 : i32
    %c0_i32_0 = arith.constant 0 : i32
    return %arg0, %c0_i32 : i32, i32
  }
  func.func @transform_2(%arg0: i32) -> (i32, i32) {
    %c0_i32 = arith.constant 0 : i32
    %c0_i32_0 = arith.constant 0 : i32
    return %arg0, %c0_i32 : i32, i32
  }
  func.func @transform_3(%arg0: i32) -> (i32, i32) {
    %c0_i32 = arith.constant 0 : i32
    %c0_i32_0 = arith.constant 0 : i32
    return %arg0, %c0_i32 : i32, i32
  }
  func.func @transform_4(%arg0: i32) -> (i32, i32) {
    %c0_i32 = arith.constant 0 : i32
    %c0_i32_0 = arith.constant 0 : i32
    return %arg0, %c0_i32 : i32, i32
  }
  func.func @transform_5(%arg0: i32) -> (i32, i32) {
    %c0_i32 = arith.constant 0 : i32
    %c0_i32_0 = arith.constant 0 : i32
    return %arg0, %c0_i32 : i32, i32
  }
}

</mosaic_0001>

<llo_original>
// kernel: tpu_custom_call.1
$region0: #{tpu_custom_call.1}
  #allocation0 [shape = 'u32[]', space=smem, size = 0x4, offset = 0x4, fixed_abs, tag = 'smem constant byte address 0x4 - core index']
  #allocation1 [shape = 'u32[144,128]{1,0:T(1,128)}', space=vmem, size = 0x12000, scoped, tag = 'internal scratch']
  %s0 = inlined_call_operand.vmem [shape: f32[32,1], index: 0, kind: input, shape index: {}]
  %s1 = inlined_call_operand.hbm [shape: f32[64,128], index: 1, kind: input, shape index: {}]
  %s2 = inlined_call_operand.hbm [shape: f32[64,128], index: 2, kind: input, shape index: {}]
  %s3 = inlined_call_operand.hbm [shape: f32[32,128], index: 3, kind: output, shape index: {0}]
  %s4 = inlined_call_operand.hbm [shape: f32[32,128], index: 4, kind: output, shape index: {1}]
  %s5 = inlined_call_operand.vmem [shape: f32[32,1], index: 5, kind: output, shape index: {2}]
  %6 = xla_tuple %s3, %s4, %s5
  %s7 = sld [smem:[#allocation0]]
  $region69: #{tpu_custom_call.1} parent=0
    _
  %s9 = ssub.s32 1, %s7
  %s10 = scalar_select 0, %s9, %s7
  $region1: #{tpu_custom_call.1} parent=0
    #allocation2 [shape = 'u8[16384]{0}', space=vmem, size = 0x4000, scoped, tag = 'input window, operand 1']
    #allocation3 [shape = 's32[2]{0}', space=sflag, size = 0x8, scoped, tag = 'scoped memory for tpu_custom_call.1']
    #allocation4 [shape = 's32[2]{0}', space=sflag, size = 0x8, scoped, tag = 'scoped memory for tpu_custom_call.1']
    #allocation5 [shape = 'u8[16384]{0}', space=vmem, size = 0x4000, scoped, tag = 'input window, operand 2']
    #allocation6 [shape = 's32[2]{0}', space=sflag, size = 0x8, scoped, tag = 'scoped memory for tpu_custom_call.1']
    #allocation7 [shape = 'u8[8192]{0}', space=vmem, size = 0x2000, scoped, tag = 'output window, operand 0']
    #allocation8 [shape = 'u8[8192]{0}', space=vmem, size = 0x2000, scoped, tag = 'output window, operand 1']
    #allocation9 [shape = 's32[2]{0}', space=sflag, size = 0x8, scoped, tag = 'scoped memory for tpu_custom_call.1']
    %11 = vsyncpa [#allocation3], 0
    %s12 = scalar_lea.sflag [#allocation3], 1
    %13 = vsyncpa %s12, 0
    %14 = vsyncpa [#allocation6], 0
    %s15 = scalar_lea.sflag [#allocation6], 1
    %16 = vsyncpa %s15, 0
    %17 = vsyncpa [#allocation4], 0
    %s18 = scalar_lea.sflag [#allocation4], 1
    %19 = vsyncpa %s18, 0
    %20 = vsyncpa [#allocation9], 0
    %s21 = scalar_lea.sflag [#allocation9], 1
    %22 = vsyncpa %s21, 0
    loop: start=0, step=1, limit=6
    $region2: #{tpu_custom_call.1} parent=1 // loop_pre_header
      _
    $region3: #{tpu_custom_call.1} parent=1 // loop_header
      %s24 = sphi 0, %s28
      %p25 = scmp.ge.s32.totalorder %s24, 6
      %s34 = sphi 0, %s36
      %s37 = sphi 0, %s34
      %s38 = sphi 0, %s37
      %s54 = sphi 0, %s38
      %s60 = sphi 0, %s62
      %s63 = sphi 0, %s60
      %s64 = sphi 0, %s63
      %s80 = sphi 0, %s64
      %s86 = sphi 0, %s88
      %s89 = sphi 0, %s86
      %s90 = sphi 0, %s89
      %s106 = sphi 0, %s90
      %s112 = sphi 0, %s114
      %s115 = sphi 0, %s112
      %s116 = sphi 0, %s115
      %s132 = sphi 0, %s116
      %s138 = sphi 0, %s140
      %s141 = sphi 0, %s138
      %s142 = sphi 0, %s141
      %s158 = sphi 0, %s142
      %s164 = sphi 0, %s166
      %s167 = sphi 0, %s164
      %s168 = sphi 0, %s167
      %s184 = sphi 0, %s168
    $region4: #{tpu_custom_call.1} parent=1 // loop_header_branch
      %27 = sbr.rel (%p25) target = $region8
    $region5: #{tpu_custom_call.1} parent=1 // loop_body
      %s29 = ssub.s32 %s24, 1
      %s30 = ssub.s32 %s24, 2
      %s31 = sadd.s32 %s24, 1
      %s32 = ssub.s32 %s24, %s31
      %p33 = scmp.eq.s32.totalorder %s32, 0
      %s35 = sadd.s32 %s34, 1
      %s36 = scalar_select %p33, %s34, %s35
      %p39 = pneg %p33
      %p40 = scmp.eq.s32.totalorder %s24, 3
      %p41 = por %p39, %p40
      %p42 = scmp.ne.s32.totalorder %s34, %s37
      %p43 = scmp.eq.s32.totalorder %s24, 0
      %p44 = por %p42, %p43
      %p45 = scmp.ne.s32.totalorder %s34, %s37
      %p46 = scmp.eq.s32.totalorder %s29, 3
      %p47 = por %p45, %p46
      %p48 = scmp.ne.s32.totalorder %s37, %s38
      %p49 = scmp.eq.s32.totalorder %s29, 0
      %p50 = por %p48, %p49
      %p51 = scmp.ne.s32.totalorder %s37, %s38
      %p52 = scmp.eq.s32.totalorder %s30, 3
      %p53 = por %p51, %p52
      %p55 = scmp.ne.s32.totalorder %s38, %s54
      %p56 = scmp.eq.s32.totalorder %s30, 0
      %p57 = por %p55, %p56
      %s58 = ssub.s32 %s24, %s31
      %p59 = scmp.eq.s32.totalorder %s58, 0
      %s61 = sadd.s32 %s60, 1
      %s62 = scalar_select %p59, %s60, %s61
      %p65 = pneg %p59
      %p66 = scmp.eq.s32.totalorder %s24, 3
      %p67 = por %p65, %p66
      %p68 = scmp.ne.s32.totalorder %s60, %s63
      %p69 = scmp.eq.s32.totalorder %s24, 0
      %p70 = por %p68, %p69
      %p71 = scmp.ne.s32.totalorder %s60, %s63
      %p72 = scmp.eq.s32.totalorder %s29, 3
      %p73 = por %p71, %p72
      %p74 = scmp.ne.s32.totalorder %s63, %s64
      %p75 = scmp.eq.s32.totalorder %s29, 0
      %p76 = por %p74, %p75
      %p77 = scmp.ne.s32.totalorder %s63, %s64
      %p78 = scmp.eq.s32.totalorder %s30, 3
      %p79 = por %p77, %p78
      %p81 = scmp.ne.s32.totalorder %s64, %s80
      %p82 = scmp.eq.s32.totalorder %s30, 0
      %p83 = por %p81, %p82
      %s84 = ssub.s32 %s24, %s31
      %p85 = scmp.eq.s32.totalorder %s84, 0
      %s87 = sadd.s32 %s86, 1
      %s88 = scalar_select %p85, %s86, %s87
      %p91 = pneg %p85
      %p92 = scmp.eq.s32.totalorder %s24, 3
      %p93 = por %p91, %p92
      %p94 = scmp.ne.s32.totalorder %s86, %s89
      %p95 = scmp.eq.s32.totalorder %s24, 0
      %p96 = por %p94, %p95
      %p97 = scmp.ne.s32.totalorder %s86, %s89
      %p98 = scmp.eq.s32.totalorder %s29, 3
      %p99 = por %p97, %p98
      %p100 = scmp.ne.s32.totalorder %s89, %s90
      %p101 = scmp.eq.s32.totalorder %s29, 0
      %p102 = por %p100, %p101
      %p103 = scmp.ne.s32.totalorder %s89, %s90
      %p104 = scmp.eq.s32.totalorder %s30, 3
      %p105 = por %p103, %p104
      %p107 = scmp.ne.s32.totalorder %s90, %s106
      %p108 = scmp.eq.s32.totalorder %s30, 0
      %p109 = por %p107, %p108
      %s110 = ssub.s32 %s24, %s31
      %p111 = scmp.eq.s32.totalorder %s110, 0
      %s113 = sadd.s32 %s112, 1
      %s114 = scalar_select %p111, %s112, %s113
      %p117 = pneg %p111
      %p118 = scmp.eq.s32.totalorder %s24, 3
      %p119 = por %p117, %p118
      %p120 = scmp.ne.s32.totalorder %s112, %s115
      %p121 = scmp.eq.s32.totalorder %s24, 0
      %p122 = por %p120, %p121
      %p123 = scmp.ne.s32.totalorder %s112, %s115
      %p124 = scmp.eq.s32.totalorder %s29, 3
      %p125 = por %p123, %p124
      %p126 = scmp.ne.s32.totalorder %s115, %s116
      %p127 = scmp.eq.s32.totalorder %s29, 0
      %p128 = por %p126, %p127
      %p129 = scmp.ne.s32.totalorder %s115, %s116
      %p130 = scmp.eq.s32.totalorder %s30, 3
      %p131 = por %p129, %p130
      %p133 = scmp.ne.s32.totalorder %s116, %s132
      %p134 = scmp.eq.s32.totalorder %s30, 0
      %p135 = por %p133, %p134
      %s136 = ssub.s32 %s24, %s31
      %p137 = scmp.eq.s32.totalorder %s136, 0
      %s139 = sadd.s32 %s138, 1
      %s140 = scalar_select %p137, %s138, %s139
      %p143 = pneg %p137
      %p144 = scmp.eq.s32.totalorder %s24, 3
      %p145 = por %p143, %p144
      %p146 = scmp.ne.s32.totalorder %s138, %s141
      %p147 = scmp.eq.s32.totalorder %s24, 0
      %p148 = por %p146, %p147
      %p149 = scmp.ne.s32.totalorder %s138, %s141
      %p150 = scmp.eq.s32.totalorder %s29, 3
      %p151 = por %p149, %p150
      %p152 = scmp.ne.s32.totalorder %s141, %s142
      %p153 = scmp.eq.s32.totalorder %s29, 0
      %p154 = por %p152, %p153
      %p155 = scmp.ne.s32.totalorder %s141, %s142
      %p156 = scmp.eq.s32.totalorder %s30, 3
      %p157 = por %p155, %p156
      %p159 = scmp.ne.s32.totalorder %s142, %s158
      %p160 = scmp.eq.s32.totalorder %s30, 0
      %p161 = por %p159, %p160
      %s162 = ssub.s32 %s24, %s31
      %p163 = scmp.eq.s32.totalorder %s162, 0
      %s165 = sadd.s32 %s164, 1
      %s166 = scalar_select %p163, %s164, %s165
      %p169 = pneg %p163
      %p170 = scmp.eq.s32.totalorder %s24, 3
      %p171 = por %p169, %p170
      %p172 = scmp.ne.s32.totalorder %s164, %s167
      %p173 = scmp.eq.s32.totalorder %s24, 0
      %p174 = por %p172, %p173
      %p175 = scmp.ne.s32.totalorder %s164, %s167
      %p176 = scmp.eq.s32.totalorder %s29, 3
      %p177 = por %p175, %p176
      %p178 = scmp.ne.s32.totalorder %s167, %s168
      %p179 = scmp.eq.s32.totalorder %s29, 0
      %p180 = por %p178, %p179
      %p181 = scmp.ne.s32.totalorder %s167, %s168
      %p182 = scmp.eq.s32.totalorder %s30, 3
      %p183 = por %p181, %p182
      %p185 = scmp.ne.s32.totalorder %s168, %s184
      %p186 = scmp.eq.s32.totalorder %s30, 0
      %p187 = por %p185, %p186
      %p188 = scmp.le.s32.totalorder 1, %s24
      %p189 = scmp.lt.s32.totalorder %s24, 5
      %p190 = pnand %p188, %p189
      %p191 = pneg %p190
      // Predicated region
      $region9: #{tpu_custom_call.1} parent=5 // pred_check
        _
      $region10: #{tpu_custom_call.1} parent=5 // pred_check_branch
        %193 = sbr.rel (%p190) target = $region12
      $region11: #{tpu_custom_call.1} parent=5 // pred_region
        %s194 = ssub.s32 %s24, 1
      $region12: #{tpu_custom_call.1} parent=5 // pred_fallthru
        _
      %p195 = scmp.lt.s32.totalorder %s24, 4
      // Predicated region
      $region13: #{tpu_custom_call.1} parent=5 // pred_check
        %p196 = pneg %p195
      $region14: #{tpu_custom_call.1} parent=5 // pred_check_branch
        %198 = sbr.rel (%p196) target = $region16
      $region15: #{tpu_custom_call.1} parent=5 // pred_region
        // Predicated region
        $region17: #{tpu_custom_call.1} parent=15 // pred_check
          %p199 = pneg %p44
        $region18: #{tpu_custom_call.1} parent=15 // pred_check_branch
          %201 = sbr.rel (%p199) target = $region20
        $region19: #{tpu_custom_call.1} parent=15 // pred_region
          %p202 = scmp.lt.s32.totalorder %s24, 3
          %s203 = scalar_select %p202, %s24, 3
          %s204 = smul.addr %s203, 8
          %s205 = scalar_lea.vmem %s0, %s204
        $region20: #{tpu_custom_call.1} parent=15 // pred_fallthru
          _
        // Predicated region
        $region21: #{tpu_custom_call.1} parent=15 // pred_check
          %p206 = pneg %p70
        $region22: #{tpu_custom_call.1} parent=15 // pred_check_branch
          %208 = sbr.rel (%p206) target = $region24
        $region23: #{tpu_custom_call.1} parent=15 // pred_region
          %s209 = sand.u32 %s60, 1
          %s210 = scalar_lea.sflag [#allocation3], %s209
          %s211 = sand.u32 %s60, 1
          %s212 = smul.addr %s211, 16
          %s213 = scalar_lea.vmem [#allocation2], %s212
          %s214 = smul.u32 2, %s24
          %s216 = ssub.s32 256, 256
          %217 = vsyncadd %s210, %s216
          %s218 = smul.addr %s214, 128
          %s219 = scalar_lea.hbm %s1, %s218
          %s220 = sshll.u32 %s213, 4
          %s221 = int_to_ptr.vmem [resolvable:$true] %s220
          %226 = dma.hbm_to_vmem [thread:$0]  %s219, 256, %s221, %s210, 128, 128, 8
        $region24: #{tpu_custom_call.1} parent=15 // pred_fallthru
          _
        // Predicated region
        $region25: #{tpu_custom_call.1} parent=15 // pred_check
          %p227 = pneg %p96
        $region26: #{tpu_custom_call.1} parent=15 // pred_check_branch
          %229 = sbr.rel (%p227) target = $region28
        $region27: #{tpu_custom_call.1} parent=15 // pred_region
          %s230 = sand.u32 %s86, 1
          %s231 = scalar_lea.sflag [#allocation6], %s230
          %s232 = sand.u32 %s86, 1
          %s233 = smul.addr %s232, 16
          %s234 = scalar_lea.vmem [#allocation5], %s233
          %s235 = smul.u32 2, %s24
          %s237 = ssub.s32 256, 256
          %238 = vsyncadd %s231, %s237
          %s239 = smul.addr %s235, 128
          %s240 = scalar_lea.hbm %s2, %s239
          %s241 = sshll.u32 %s234, 4
          %s242 = int_to_ptr.vmem [resolvable:$true] %s241
          %247 = dma.hbm_to_vmem [thread:$0]  %s240, 256, %s242, %s231, 128, 128, 8
        $region28: #{tpu_custom_call.1} parent=15 // pred_fallthru
          _
      $region16: #{tpu_custom_call.1} parent=5 // pred_fallthru
        _
      %p248 = scmp.le.s32.totalorder 1, %s24
      %p249 = scmp.lt.s32.totalorder %s24, 5
      %p250 = pnand %p248, %p249
      %p251 = pneg %p250
      // Predicated region
      $region29: #{tpu_custom_call.1} parent=5 // pred_check
        _
      $region30: #{tpu_custom_call.1} parent=5 // pred_check_branch
        %253 = sbr.rel (%p250) target = $region32
      $region31: #{tpu_custom_call.1} parent=5 // pred_region
        %s254 = ssub.s32 %s24, 1
        %s255 = sand.u32 %s63, 1
        %s256 = scalar_lea.sflag [#allocation3], %s255
        %s257 = sand.u32 %s63, 1
        %s258 = smul.addr %s257, 16
        %s259 = scalar_lea.vmem [#allocation2], %s258
        // Predicated region
        $region33: #{tpu_custom_call.1} parent=31 // pred_check
          %p260 = pneg %p76
        $region34: #{tpu_custom_call.1} parent=31 // pred_check_branch
          %262 = sbr.rel (%p260) target = $region36
        $region35: #{tpu_custom_call.1} parent=31 // pred_region
          %263 = dma.done %s256, 256
        $region36: #{tpu_custom_call.1} parent=31 // pred_fallthru
          _
        %s264 = sand.u32 %s89, 1
        %s265 = scalar_lea.sflag [#allocation6], %s264
        %s266 = sand.u32 %s89, 1
        %s267 = smul.addr %s266, 16
        %s268 = scalar_lea.vmem [#allocation5], %s267
        // Predicated region
        $region37: #{tpu_custom_call.1} parent=31 // pred_check
          %p269 = pneg %p102
        $region38: #{tpu_custom_call.1} parent=31 // pred_check_branch
          %271 = sbr.rel (%p269) target = $region40
        $region39: #{tpu_custom_call.1} parent=31 // pred_region
          %272 = dma.done %s265, 256
        $region40: #{tpu_custom_call.1} parent=31 // pred_fallthru
          _
        %p273 = scmp.lt.s32.totalorder %s29, 3
        %s274 = scalar_select %p273, %s29, 3
        %s275 = smul.addr %s274, 8
        %s276 = scalar_lea.vmem %s0, %s275
        %p277 = pneg %p50
        %p278 = pneg %p47
        %s279 = sand.u32 %s63, 1
        %s280 = scalar_lea.sflag [#allocation3], %s279
        %s281 = sand.u32 %s63, 1
        %s282 = smul.addr %s281, 16
        %s283 = scalar_lea.vmem [#allocation2], %s282
        %p284 = pneg %p76
        %p285 = pneg %p73
        %s286 = sand.u32 %s89, 1
        %s287 = scalar_lea.sflag [#allocation6], %s286
        %s288 = sand.u32 %s89, 1
        %s289 = smul.addr %s288, 16
        %s290 = scalar_lea.vmem [#allocation5], %s289
        %p291 = pneg %p102
        %p292 = pneg %p99
        %p293 = pneg %p128
        %p294 = pneg %p125
        %s295 = sand.u32 %s115, 1
        %s296 = scalar_lea.sflag [#allocation4], %s295
        %s297 = sand.u32 %s115, 1
        %s298 = smul.addr %s297, 8
        %s299 = scalar_lea.vmem [#allocation7], %s298
        %p300 = pneg %p154
        %p301 = pneg %p151
        %s302 = sand.u32 %s141, 1
        %s303 = scalar_lea.sflag [#allocation9], %s302
        %s304 = sand.u32 %s141, 1
        %s305 = smul.addr %s304, 8
        %s306 = scalar_lea.vmem [#allocation8], %s305
        %p307 = pneg %p180
        %p308 = pneg %p177
        %p309 = scmp.lt.s32.totalorder %s29, 3
        %s310 = scalar_select %p309, %s29, 3
        %s311 = smul.addr %s310, 8
        %s312 = scalar_lea.vmem %s5, %s311
        %p313 = scmp.lt.s32.totalorder %s29, 3
        %s314 = scalar_select %p313, %s29, 3
        %s315 = smul.addr %s314, 8
        %s316 = scalar_lea.vmem %s0, %s315
        %s317 = smul.u32 2, %s29
        %s318 = smul.u32 2, %s29
        %p319 = scmp.lt.s32.totalorder %s29, 3
        %s320 = scalar_select %p319, %s29, 3
        %s321 = smul.addr %s320, 8
        %s322 = scalar_lea.vmem %s5, %s321
        %v323 = vld [vmem:[%s259] ss:$2 sm:$0xff]
        %s324 = scalar_lea.vmem %s259, 1 [#allocation2]
        %v325 = vld [vmem:[%s324] ss:$2 sm:$0xff]
        %v326 = vld [vmem:[%s268] ss:$2 sm:$0xff]
        %s327 = scalar_lea.vmem %s268, 1 [#allocation5]
        %v328 = vld [vmem:[%s327] ss:$2 sm:$0xff]
        %v329 = vmul.f32 %v326, 1.442695
        %v330 = vpow.pop %v329
        %v331 = vmul.f32 %v328, 1.442695
        %v332 = vpow.pop %v331
        %v333 = vrcp.pop %v330
        %v334 = vrcp.pop %v332
        %v335 = vsub.f32 %v323, %v325
        %v336 = vmul.f32 %v335, %v335
        %v337 = vadd.f32 %v330, %v336
        %v338 = vmul.f32 %v337, %v334
        %v339 = vadd.f32 %v332, %v336
        %v340 = vmul.f32 %v339, %v333
        %v341 = vadd.f32 %v338, %v340
        %v342 = vsub.f32 %v341, 2.0
        %343 = vadd.xlane.f32.xlu0 %v342
        %v344 = vpop.xlane.xlu0 %343
        %v345 = vmul.f32 %v344, 0.5
        %vm346 = vcmask 7168
        %347 = vst.msk [vmem:[%s322] sm:$0xff] %vm346, %v345
        %v348 = vld [vmem:[%s316] sm:$0xff]
        %v349 = vsub.f32 1.0, %v348
        %351 = vset.pattern.permute.xlu0 0
        %352 = vperm.xlu0 %351, %v348
        %v353 = vpop.permute.xlu0 %352
        %v355 = vmul.f32 %v353, %v323
        %357 = vset.pattern.permute.xlu0 0
        %358 = vperm.xlu0 %357, %v349
        %v359 = vpop.permute.xlu0 %358
        %v361 = vmul.f32 %v359, %v325
        %v362 = vadd.f32 %v355, %v361
        %v363 = vsub.f32 %v323, %v362
        %v364 = vsub.f32 %v325, %v362
        %v365 = vmul.f32 %v363, %v363
        %v366 = vadd.f32 %v330, %v365
        %v367 = vmul.f32 %v353, %v366
        %v368 = vmul.f32 %v364, %v364
        %v369 = vadd.f32 %v332, %v368
        %v370 = vmul.f32 %v359, %v369
        %v371 = vadd.f32 %v367, %v370
        %372 = vst [vmem:[%s299] sm:$0xff] %v362
        %v373 = vadd.f32 %v371, 1e-08
        %v374 = vlog2.pop %v373
        %v375 = vmul.f32 %v374, 0.6931472
        %376 = vst [vmem:[%s306] sm:$0xff] %v375
        %s377 = sand.u32 %s115, 1
        %s378 = scalar_lea.sflag [#allocation4], %s377
        %s379 = sand.u32 %s115, 1
        %s380 = smul.addr %s379, 8
        %s381 = scalar_lea.vmem [#allocation7], %s380
        %s382 = sand.u32 %s141, 1
        %s383 = scalar_lea.sflag [#allocation9], %s382
        %s384 = sand.u32 %s141, 1
        %s385 = smul.addr %s384, 8
        %s386 = scalar_lea.vmem [#allocation8], %s385
        %p387 = scmp.lt.s32.totalorder %s29, 3
        %s388 = scalar_select %p387, %s29, 3
        %s389 = smul.addr %s388, 8
        %s390 = scalar_lea.vmem %s5, %s389
        // Predicated region
        $region41: #{tpu_custom_call.1} parent=31 // pred_check
          %p391 = pneg %p125
        $region42: #{tpu_custom_call.1} parent=31 // pred_check_branch
          %393 = sbr.rel (%p391) target = $region44
        $region43: #{tpu_custom_call.1} parent=31 // pred_region
          %s395 = ssub.s32 128, 128
          %396 = vsyncadd %s378, %s395
          %s397 = smul.addr %s29, 128
          %s398 = scalar_lea.hbm %s3, %s397
          %s400 = sshll.u32 %s381, 4
          %s401 = int_to_ptr.vmem [resolvable:$true] %s400
          %403 = dma.vmem_to_hbm [thread:$0]  %s401, 128, %s398, %s378
        $region44: #{tpu_custom_call.1} parent=31 // pred_fallthru
          _
        // Predicated region
        $region45: #{tpu_custom_call.1} parent=31 // pred_check
          %p404 = pneg %p151
        $region46: #{tpu_custom_call.1} parent=31 // pred_check_branch
          %406 = sbr.rel (%p404) target = $region48
        $region47: #{tpu_custom_call.1} parent=31 // pred_region
          %s408 = ssub.s32 128, 128
          %409 = vsyncadd %s383, %s408
          %s410 = smul.addr %s29, 128
          %s411 = scalar_lea.hbm %s4, %s410
          %s413 = sshll.u32 %s386, 4
          %s414 = int_to_ptr.vmem [resolvable:$true] %s413
          %416 = dma.vmem_to_hbm [thread:$0]  %s414, 128, %s411, %s383
        $region48: #{tpu_custom_call.1} parent=31 // pred_fallthru
          _
        // Predicated region
        $region49: #{tpu_custom_call.1} parent=31 // pred_check
          %p417 = pneg %p177
        $region50: #{tpu_custom_call.1} parent=31 // pred_check_branch
          %419 = sbr.rel (%p417) target = $region52
        $region51: #{tpu_custom_call.1} parent=31 // pred_region
          _
        $region52: #{tpu_custom_call.1} parent=31 // pred_fallthru
          _
      $region32: #{tpu_custom_call.1} parent=5 // pred_fallthru
        _
      %p420 = scmp.le.s32.totalorder 2, %s24
      // Predicated region
      $region53: #{tpu_custom_call.1} parent=5 // pred_check
        %p421 = pneg %p420
      $region54: #{tpu_custom_call.1} parent=5 // pred_check_branch
        %423 = sbr.rel (%p421) target = $region56
      $region55: #{tpu_custom_call.1} parent=5 // pred_region
        %s424 = ssub.s32 %s24, 2
        // Predicated region
        $region57: #{tpu_custom_call.1} parent=55 // pred_check
          %p425 = pneg %p131
        $region58: #{tpu_custom_call.1} parent=55 // pred_check_branch
          %427 = sbr.rel (%p425) target = $region60
        $region59: #{tpu_custom_call.1} parent=55 // pred_region
          %s428 = sand.u32 %s116, 1
          %s429 = scalar_lea.sflag [#allocation4], %s428
          %s430 = sand.u32 %s116, 1
          %s431 = smul.addr %s430, 8
          %s432 = scalar_lea.vmem [#allocation7], %s431
          %433 = dma.done %s429, 128
        $region60: #{tpu_custom_call.1} parent=55 // pred_fallthru
          _
        // Predicated region
        $region61: #{tpu_custom_call.1} parent=55 // pred_check
          %p434 = pneg %p157
        $region62: #{tpu_custom_call.1} parent=55 // pred_check_branch
          %436 = sbr.rel (%p434) target = $region64
        $region63: #{tpu_custom_call.1} parent=55 // pred_region
          %s437 = sand.u32 %s142, 1
          %s438 = scalar_lea.sflag [#allocation9], %s437
          %s439 = sand.u32 %s142, 1
          %s440 = smul.addr %s439, 8
          %s441 = scalar_lea.vmem [#allocation8], %s440
          %442 = dma.done %s438, 128
        $region64: #{tpu_custom_call.1} parent=55 // pred_fallthru
          _
        // Predicated region
        $region65: #{tpu_custom_call.1} parent=55 // pred_check
          %p443 = pneg %p183
        $region66: #{tpu_custom_call.1} parent=55 // pred_check_branch
          %445 = sbr.rel (%p443) target = $region68
        $region67: #{tpu_custom_call.1} parent=55 // pred_region
          %p446 = scmp.lt.s32.totalorder %s30, 3
          %s447 = scalar_select %p446, %s30, 3
          %s448 = smul.addr %s447, 8
          %s449 = scalar_lea.vmem %s5, %s448
        $region68: #{tpu_custom_call.1} parent=55 // pred_fallthru
          _
      $region56: #{tpu_custom_call.1} parent=5 // pred_fallthru
        _
    $region6: #{tpu_custom_call.1} parent=1 // loop_footer
      %s28 = sadd.s32 1, %s24
    $region7: #{tpu_custom_call.1} parent=1 // loop_footer_branch
      %23 = sbr.rel target = $region3
    $region8: #{tpu_custom_call.1} parent=1 // loop_exit
      _
    %450 = vsyncpa [#allocation3], 1
    %s451 = scalar_lea.sflag [#allocation3], 1
    %452 = vsyncpa %s451, 1
    %453 = vsyncpa [#allocation6], 1
    %s454 = scalar_lea.sflag [#allocation6], 1
    %455 = vsyncpa %s454, 1
    %456 = vsyncpa [#allocation4], 1
    %s457 = scalar_lea.sflag [#allocation4], 1
    %458 = vsyncpa %s457, 1
    %459 = vsyncpa [#allocation9], 1
    %s460 = scalar_lea.sflag [#allocation9], 1
    %461 = vsyncpa %s460, 1

</llo_original>
